<compile_context>
chip_gen: v7x
topology: tpu7x:2x2x1
jax: 0.10.0
libtpu: 0.0.40
codegen_flags: <defaults>
</compile_context>

<pallas_src>
import math

import jax
import jax.numpy as jnp
from jax.experimental import pallas as pl
from jax.experimental.pallas import tpu as pltpu


# --------------------------------- kernel ------------------------------------

def shift_kernel(x_ref, s_ref, o_ref):
    # x_ref: (tile_rows, lanes), s_ref: (1, lanes) -> broadcast add on the VPU.
    o_ref[...] = x_ref[...] + s_ref[...]


# ------------------------------ tile helpers ----------------------------------

def _target_block_bytes() -> int:
    """Generation-aware block-byte target (review: ~1-2 MiB v5e, 2-4 v6e, 4-8 v7x)."""
    kind = ""
    try:
        kind = jax.devices()[0].device_kind.lower()
    except Exception:
        pass
    if "v7" in kind:
        return 8 << 20
    if "v6" in kind:
        return 4 << 20
    # v5e / unknown: conservative, fits the 16 MiB default scoped VMEM
    # (double-buffered in + out ~= 4x block).
    return 2 << 20


def _pick_row_tile(rows: int, lanes: int, itemsize: int, target_bytes: int) -> int:
    """Row tile: ~target_bytes per block, multiple of the packed sublane count."""
    sub = max(8, 32 // itemsize)          # 8 for f32, 16 for bf16, 32 for int8/fp8
    bytes_per_row = lanes * itemsize
    tile = max(sub, (target_bytes // bytes_per_row) // sub * sub)
    if tile >= rows:
        # A single block would cover everything.  For non-trivial inputs split
        # into >=2 parallel blocks so both v7x TensorCores get work.
        if rows * bytes_per_row > (1 << 20) and rows >= 2 * sub:
            tile = pl.cdiv(pl.cdiv(rows, 2), sub) * sub
        else:
            tile = rows                   # one full-extent block (always legal)
    return tile


def _choose_lanes(hidden: int, total: int) -> tuple[int, int]:
    """Return (lanes, reps): lane-dense last dim and how many hidden vectors per row."""
    if hidden % 128 == 0:
        return hidden, 1
    lcm = math.lcm(hidden, 128)
    if lcm <= 2048 and total % lcm == 0:
        return lcm, lcm // hidden
    return hidden, 1                      # fallback: masked stores, still correct


# -------------------------------- wrapper ------------------------------------

def shift_forward(x: jax.Array, shift: jax.Array) -> jax.Array:
    """x: (..., H), shift: (H,)  ->  x + shift (broadcast over last dim)."""
    orig_shape = x.shape
    H = orig_shape[-1]
    assert shift.shape == (H,), shift.shape

    total = x.size
    itemsize = jnp.dtype(x.dtype).itemsize

    # Lane densification: present a multiple-of-128-wide last dim when possible
    # so every vector store is unmasked.  Element order is row-major, so tiling
    # the shift vector keeps semantics identical.
    lanes, reps = _choose_lanes(H, total)
    flat = x.reshape(-1, lanes)
    if reps > 1:
        s_row = jnp.tile(shift, reps).reshape(1, lanes)
    else:
        s_row = shift.reshape(1, lanes)

    rows = flat.shape[0]
    target_bytes = _target_block_bytes()
    tile = _pick_row_tile(rows, lanes, itemsize, target_bytes)
    grid = (pl.cdiv(rows, tile),)         # ragged last block handled by Pallas

    # Double-buffered input + output ~= 4x block bytes; raise the scoped VMEM
    # limit only when the big (v7x-sized) blocks actually need it.
    block_bytes = tile * lanes * itemsize
    vmem_needed = 4 * block_bytes + 2 * lanes * itemsize
    cp_kwargs = dict(dimension_semantics=("parallel",))
    if vmem_needed > (12 << 20):
        cp_kwargs["vmem_limit_bytes"] = min(max(int(vmem_needed * 3 // 2), 32 << 20),
                                            48 << 20)

    out = pl.pallas_call(
        shift_kernel,
        out_shape=jax.ShapeDtypeStruct((rows, lanes), x.dtype),
        grid=grid,
        in_specs=[
            pl.BlockSpec((tile, lanes), lambda i: (i, 0)),
            pl.BlockSpec((1, lanes), lambda i: (0, 0)),   # shift stays resident
        ],
        out_specs=pl.BlockSpec((tile, lanes), lambda i: (i, 0)),
        compiler_params=pltpu.CompilerParams(**cp_kwargs),
    )(flat, s_row)

    return out.reshape(orig_shape)


# ---------------------------------- main --------------------------------------

if __name__ == "__main__":
    hidden = 32
    batch, seq = 2, 64

    key = jax.random.PRNGKey(0)
    kx, ks = jax.random.split(key)
    x = jax.random.normal(kx, (batch, seq, hidden), dtype=jnp.float32)
    # Reference module initializes the parameter to zeros; use a non-trivial
    # value here so the broadcast-add is actually exercised.
    shift = jax.random.normal(ks, (hidden,), dtype=jnp.float32)

    ref = x + shift[None, None, :]

    out = shift_forward(x, shift)
    out = jax.block_until_ready(out)

    assert out.shape == x.shape, out.shape
    assert bool(jnp.all(jnp.isfinite(out)))
    assert bool(jnp.allclose(out, ref, atol=1e-6, rtol=1e-6))
    print("KERNEL_OK")
</pallas_src>

<mosaic_0001>
module attributes {stable_mosaic.version = 11 : i64} {
  func.func @shift_kernel(%arg0: i32, %arg1: memref<32x128xf32, #tpu.memory_space<vmem>>, %arg2: memref<1x128xf32, #tpu.memory_space<vmem>>, %arg3: memref<32x128xf32, #tpu.memory_space<vmem>>) attributes {dimension_semantics = [#tpu.dimension_semantics<parallel>], iteration_bounds = array<i64: 1>, scalar_prefetch = 0 : i64, scratch_operands = 0 : i64, tpu.core_type = #tpu.core_type<tc>, window_params = [{transform_indices = @transform_0, window_bounds = array<i64: 32, 128>}, {pipeline_mode = #tpu.pipeline_mode<synchronous>, transform_indices = @transform_1, window_bounds = array<i64: 1, 128>}, {transform_indices = @transform_2, window_bounds = array<i64: 32, 128>}]} {
    %c0 = arith.constant 0 : index
    %c0_0 = arith.constant 0 : index
    %0 = vector.load %arg1[%c0, %c0_0] : memref<32x128xf32, #tpu.memory_space<vmem>>, vector<32x128xf32>
    %c0_1 = arith.constant 0 : index
    %c0_2 = arith.constant 0 : index
    %1 = vector.load %arg2[%c0_1, %c0_2] : memref<1x128xf32, #tpu.memory_space<vmem>>, vector<1x128xf32>
    %2 = vector.broadcast %1 : vector<1x128xf32> to vector<32x128xf32>
    %3 = arith.addf %0, %2 : vector<32x128xf32>
    %c0_3 = arith.constant 0 : index
    %c0_4 = arith.constant 0 : index
    %4 = vector.load %arg3[%c0_3, %c0_4] : memref<32x128xf32, #tpu.memory_space<vmem>>, vector<32x128xf32>
    tpu.vector_store %arg3[%c0_3, %c0_4], %3 {strides = array<i32>} : memref<32x128xf32, #tpu.memory_space<vmem>>, vector<32x128xf32>,
    return
  }
  func.func @transform_0(%arg0: i32) -> (i32, i32) {
    %c0_i32 = arith.constant 0 : i32
    %c0_i32_0 = arith.constant 0 : i32
    return %arg0, %c0_i32 : i32, i32
  }
  func.func @transform_1(%arg0: i32) -> (i32, i32) {
    %c0_i32 = arith.constant 0 : i32
    %c0_i32_0 = arith.constant 0 : i32
    %c0_i32_1 = arith.constant 0 : i32
    return %c0_i32, %c0_i32_0 : i32, i32
  }
  func.func @transform_2(%arg0: i32) -> (i32, i32) {
    %c0_i32 = arith.constant 0 : i32
    %c0_i32_0 = arith.constant 0 : i32
    return %arg0, %c0_i32 : i32, i32
  }
}

</mosaic_0001>

<llo_original>
// kernel: tpu_custom_call.1
$region0: #{tpu_custom_call.1}
  #allocation0 [shape = 'u32[]', space=smem, size = 0x4, offset = 0x4, fixed_abs, tag = 'smem constant byte address 0x4 - core index']
  #allocation1 [shape = 'u32[144,128]{1,0:T(1,128)}', space=vmem, size = 0x12000, scoped, tag = 'internal scratch']
  %s0 = inlined_call_operand.hbm [shape: f32[32,128], index: 0, kind: input, shape index: {}]
  %s1 = inlined_call_operand.vmem [shape: f32[1,128], index: 1, kind: input, shape index: {}]
  %s2 = inlined_call_operand.hbm [shape: f32[32,128], index: 2, kind: output, shape index: {}]
  %s3 = sld [smem:[#allocation0]]
  $region22: #{tpu_custom_call.1} parent=0
    _
  %s5 = ssub.s32 1, %s3
  %s6 = scalar_select 0, %s5, %s3
  $region1: #{tpu_custom_call.1} parent=0
    #allocation2 [shape = 'u8[16384]{0}', space=vmem, size = 0x4000, scoped, tag = 'input window, operand 0, single buffered']
    #allocation3 [shape = 's32[1]{0}', space=sflag, size = 0x4, scoped, tag = 'scoped memory for tpu_custom_call.1']
    #allocation4 [shape = 's32[1]{0}', space=sflag, size = 0x4, scoped, tag = 'scoped memory for tpu_custom_call.1']
    #allocation5 [shape = 'u8[16384]{0}', space=vmem, size = 0x4000, scoped, tag = 'output window, operand 0, single buffered']
    %7 = vsyncpa [#allocation3], 0
    %8 = vsyncpa [#allocation4], 0
    // Predicated region
    $region2: #{tpu_custom_call.1} parent=1 // pred_check
      _
    $region3: #{tpu_custom_call.1} parent=1 // pred_check_branch
      %10 = sbr.rel (0) target = $region5
    $region4: #{tpu_custom_call.1} parent=1 // pred_region
      %s12 = ssub.s32 512, 512
      %13 = vsyncadd [#allocation3], %s12
      %s14 = sshll.u32 [#allocation2], 4
      %s15 = int_to_ptr.vmem [resolvable:$true] %s14
      %20 = dma.hbm_to_vmem [thread:$0]  %s0, 512, %s15, [#allocation3], 128, 128, 8
    $region5: #{tpu_custom_call.1} parent=1 // pred_fallthru
      _
    // Predicated region
    $region6: #{tpu_custom_call.1} parent=1 // pred_check
      _
    $region7: #{tpu_custom_call.1} parent=1 // pred_check_branch
      %22 = sbr.rel (0) target = $region9
    $region8: #{tpu_custom_call.1} parent=1 // pred_region
      _
    $region9: #{tpu_custom_call.1} parent=1 // pred_fallthru
      _
    // Predicated region
    $region10: #{tpu_custom_call.1} parent=1 // pred_check
      _
    $region11: #{tpu_custom_call.1} parent=1 // pred_check_branch
      %24 = sbr.rel (0) target = $region13
    $region12: #{tpu_custom_call.1} parent=1 // pred_region
      %25 = dma.done [#allocation3], 512
    $region13: #{tpu_custom_call.1} parent=1 // pred_fallthru
      _
    %v26 = vld [vmem:[#allocation2] sm:$0xff]
    %v27 = vld [vmem:[#allocation2 + $0x8] sm:$0xff]
    %v28 = vld [vmem:[#allocation2 + $0x10] sm:$0xff]
    %v29 = vld [vmem:[#allocation2 + $0x18] sm:$0xff]
    %v30 = vld [vmem:[%s1] sm:$0x1]
    %v32 = vlaneseq
    %v33 = vshrl.u32 %v32, 7
    %v34 = vsub.s32 0, %v33
    %v35 = vrot.slane %v30, %v34
    %v37 = vadd.f32 %v26, %v35
    %v38 = vadd.f32 %v27, %v35
    %v39 = vadd.f32 %v28, %v35
    %v40 = vadd.f32 %v29, %v35
    %41 = vst [vmem:[#allocation5] sm:$0xff] %v37
    %42 = vst [vmem:[#allocation5 + $0x8] sm:$0xff] %v38
    %43 = vst [vmem:[#allocation5 + $0x10] sm:$0xff] %v39
    %44 = vst [vmem:[#allocation5 + $0x18] sm:$0xff] %v40
    // Predicated region
    $region14: #{tpu_custom_call.1} parent=1 // pred_check
      _
    $region15: #{tpu_custom_call.1} parent=1 // pred_check_branch
      %46 = sbr.rel (0) target = $region17
    $region16: #{tpu_custom_call.1} parent=1 // pred_region
      %s48 = ssub.s32 512, 512
      %49 = vsyncadd [#allocation4], %s48
      %s50 = sshll.u32 [#allocation5], 4
      %s51 = int_to_ptr.vmem [resolvable:$true] %s50
      %56 = dma.vmem_to_hbm [thread:$0]  %s51, 512, %s2, [#allocation4], 128, 128, 8
    $region17: #{tpu_custom_call.1} parent=1 // pred_fallthru
      _
    // Predicated region
    $region18: #{tpu_custom_call.1} parent=1 // pred_check
      _
    $region19: #{tpu_custom_call.1} parent=1 // pred_check_branch
      %58 = sbr.rel (0) target = $region21
    $region20: #{tpu_custom_call.1} parent=1 // pred_region
      %59 = dma.done [#allocation4], 512
    $region21: #{tpu_custom_call.1} parent=1 // pred_fallthru
      _
    %60 = vsyncpa [#allocation3], 1
    %61 = vsyncpa [#allocation4], 1

</llo_original>
